<compile_context>
chip_gen: v7x
topology: tpu7x:2x2x1
jax: 0.10.0
libtpu: 0.0.40
codegen_flags: <defaults>
</compile_context>

<pallas_src>
import functools

import jax
import jax.numpy as jnp
from jax import lax
from jax.experimental import pallas as pl
from jax.experimental.pallas import tpu as pltpu


def rln_kernel(x_ref, w_ref, b_ref, out_ref, mean_ref, std_ref, *, eps, inv_n):
    # x_ref / out_ref : (b_blk, C, HW)   lane-dense over HW
    # w_ref / b_ref   : (1, C, 1)        per-channel affine params
    # mean_ref/std_ref: (b_blk, 1, 1)    f32 per-batch statistics
    # Pass 1: mean.
    x = x_ref[...].astype(jnp.float32)
    row_sum = jnp.sum(x, axis=2, keepdims=True)              # (b_blk, C, 1)
    mean = jnp.sum(row_sum, axis=1, keepdims=True) * inv_n    # (b_blk, 1, 1)

    # Pass 2: variance (re-read x instead of keeping a centered temp live).
    x2 = x_ref[...].astype(jnp.float32)
    d = x2 - mean
    sq_row = jnp.sum(d * d, axis=2, keepdims=True)            # (b_blk, C, 1)
    var = jnp.sum(sq_row, axis=1, keepdims=True) * inv_n      # (b_blk, 1, 1)

    inv_std = lax.rsqrt(var + eps)                            # EUP rsqrt
    mean_ref[...] = mean
    std_ref[...] = jnp.sqrt(var + eps)                        # exact std for meta1

    # Fold the affine: out = x*scale + shift  (2 VPU ops / element).
    w = w_ref[...].astype(jnp.float32)                        # (1, C, 1)
    b = b_ref[...].astype(jnp.float32)                        # (1, C, 1)
    scale = inv_std * w                                       # (b_blk, C, 1)
    shift = b - mean * scale                                  # (b_blk, C, 1)

    # Pass 3: normalize + store.
    x3 = x_ref[...].astype(jnp.float32)
    out_ref[...] = (x3 * scale + shift).astype(out_ref.dtype)


def rln_forward(x_nchw, weight, bias, m1_w, m1_b, m2_w, m2_b, *, eps=1e-5):
    """RLN.forward. x_nchw: (B,C,H,W); weight/bias/m*_w/m*_b: (C,).

    Returns (out (B,C,H,W), rescale (B,C,1,1), rebias (B,C,1,1)).
    """
    B, C, H, W = x_nchw.shape
    HW = H * W
    N = C * HW

    # Lane-dense view of the NCHW tensor (free reshape, no transpose).
    x3 = x_nchw.reshape(B, C, HW)
    w3 = weight.reshape(1, C, 1)
    b3 = bias.reshape(1, C, 1)

    # --- block sizing -------------------------------------------------------
    # x block padded footprint per batch element (f32, (8,128) tile padding).
    c_pad = -(-C // 8) * 8
    hw_pad = -(-HW // 128) * 128
    per_batch_bytes = c_pad * hw_pad * 4
    # Target a few-MiB x block (near-roofline DMA), but keep a handful of
    # grid steps so the "parallel" axis feeds both v7x TensorCores.
    target_block_bytes = 4 << 20
    b_blk = max(1, min(B, target_block_bytes // per_batch_bytes))
    b_blk = min(b_blk, max(1, B // min(B, 4)))
    while B % b_blk:
        b_blk -= 1
    grid = (B // b_blk,)

    kernel = functools.partial(rln_kernel, eps=float(eps), inv_n=1.0 / float(N))
    out3, mean, std = pl.pallas_call(
        kernel,
        out_shape=(
            jax.ShapeDtypeStruct((B, C, HW), x_nchw.dtype),
            jax.ShapeDtypeStruct((B, 1, 1), jnp.float32),
            jax.ShapeDtypeStruct((B, 1, 1), jnp.float32),
        ),
        grid_spec=pltpu.PrefetchScalarGridSpec(
            num_scalar_prefetch=0,
            grid=grid,
            in_specs=[
                pl.BlockSpec((b_blk, C, HW), lambda b: (b, 0, 0)),
                pl.BlockSpec((1, C, 1), lambda b: (0, 0, 0)),
                pl.BlockSpec((1, C, 1), lambda b: (0, 0, 0)),
            ],
            out_specs=(
                pl.BlockSpec((b_blk, C, HW), lambda b: (b, 0, 0)),
                pl.BlockSpec((b_blk, 1, 1), lambda b: (b, 0, 0)),
                pl.BlockSpec((b_blk, 1, 1), lambda b: (b, 0, 0)),
            ),
        ),
        compiler_params=pltpu.CompilerParams(
            dimension_semantics=("parallel",),
            vmem_limit_bytes=32 * 1024 * 1024,
        ),
    )(x3, w3, b3)

    out = out3.reshape(B, C, H, W)
    # meta1/meta2 are 1x1 convs applied to (B,1,1,1) maps == per-channel
    # affine of the scalar statistics; done here in plain XLA (B*C elements,
    # fused for free) and kept in f32.
    std4 = std.reshape(B, 1, 1, 1)
    mean4 = mean.reshape(B, 1, 1, 1)
    rescale = m1_w.reshape(1, C, 1, 1) * std4 + m1_b.reshape(1, C, 1, 1)
    rebias = m2_w.reshape(1, C, 1, 1) * mean4 + m2_b.reshape(1, C, 1, 1)
    return out, rescale, rebias


def rln_ref(x, weight, bias, m1_w, m1_b, m2_w, m2_b, eps=1e-5):
    """Pure-JAX reference mirroring the PyTorch forward (NCHW)."""
    mean = jnp.mean(x, axis=(1, 2, 3), keepdims=True)
    std = jnp.sqrt(jnp.mean((x - mean) ** 2, axis=(1, 2, 3), keepdims=True) + eps)
    normalized = (x - mean) / std
    out = normalized * weight.reshape(1, -1, 1, 1) + bias.reshape(1, -1, 1, 1)
    rescale = m1_w.reshape(1, -1, 1, 1) * std + m1_b.reshape(1, -1, 1, 1)
    rebias = m2_w.reshape(1, -1, 1, 1) * mean + m2_b.reshape(1, -1, 1, 1)
    return out, rescale, rebias


if __name__ == "__main__":
    B, C, H, W = 2, 4, 16, 16          # HW = 256 -> lane-dense, C*H*W = 1024

    key = jax.random.PRNGKey(0)
    kx, kw, kb, k1w, k1b, k2w, k2b = jax.random.split(key, 7)
    x = jax.random.normal(kx, (B, C, H, W), jnp.float32)
    # PyTorch inits: weight=1, bias=0, meta weights trunc_normal(std=0.02),
    # meta1 bias=1, meta2 bias=0; add noise so the self-test is non-trivial.
    weight = 1.0 + 0.1 * jax.random.normal(kw, (C,), jnp.float32)
    bias = 0.1 * jax.random.normal(kb, (C,), jnp.float32)
    m1_w = 0.02 * jax.random.normal(k1w, (C,), jnp.float32)
    m1_b = 1.0 + 0.1 * jax.random.normal(k1b, (C,), jnp.float32)
    m2_w = 0.02 * jax.random.normal(k2w, (C,), jnp.float32)
    m2_b = 0.1 * jax.random.normal(k2b, (C,), jnp.float32)

    fwd = jax.jit(rln_forward, static_argnames=("eps",))
    out, rescale, rebias = jax.block_until_ready(
        fwd(x, weight, bias, m1_w, m1_b, m2_w, m2_b, eps=1e-5))
    ref_out, ref_rescale, ref_rebias = rln_ref(
        x, weight, bias, m1_w, m1_b, m2_w, m2_b, eps=1e-5)

    assert out.shape == (B, C, H, W)
    assert rescale.shape == (B, C, 1, 1) and rebias.shape == (B, C, 1, 1)
    assert jnp.allclose(out, ref_out, atol=1e-4, rtol=1e-4), "out mismatch"
    assert jnp.allclose(rescale, ref_rescale, atol=1e-4, rtol=1e-4), "rescale mismatch"
    assert jnp.allclose(rebias, ref_rebias, atol=1e-4, rtol=1e-4), "rebias mismatch"
    print("KERNEL_OK")
</pallas_src>

<mosaic_0001>
module attributes {stable_mosaic.version = 11 : i64} {
  func.func @rln_kernel(%arg0: i32, %arg1: memref<1x4x256xf32, #tpu.memory_space<vmem>>, %arg2: memref<1x4x1xf32, #tpu.memory_space<vmem>>, %arg3: memref<1x4x1xf32, #tpu.memory_space<vmem>>, %arg4: memref<1x4x256xf32, #tpu.memory_space<vmem>>, %arg5: memref<1x1x1xf32, #tpu.memory_space<vmem>>, %arg6: memref<1x1x1xf32, #tpu.memory_space<vmem>>) attributes {dimension_semantics = [#tpu.dimension_semantics<parallel>], iteration_bounds = array<i64: 2>, scalar_prefetch = 0 : i64, scratch_operands = 0 : i64, tpu.core_type = #tpu.core_type<tc>, window_params = [{transform_indices = @transform_0, window_bounds = array<i64: 1, 4, 256>}, {pipeline_mode = #tpu.pipeline_mode<synchronous>, transform_indices = @transform_1, window_bounds = array<i64: 1, 4, 1>}, {pipeline_mode = #tpu.pipeline_mode<synchronous>, transform_indices = @transform_2, window_bounds = array<i64: 1, 4, 1>}, {transform_indices = @transform_3, window_bounds = array<i64: 1, 4, 256>}, {transform_indices = @transform_4, window_bounds = array<i64: 1, 1, 1>}, {transform_indices = @transform_5, window_bounds = array<i64: 1, 1, 1>}]} {
    %c0 = arith.constant 0 : index
    %c0_0 = arith.constant 0 : index
    %c0_1 = arith.constant 0 : index
    %0 = vector.load %arg1[%c0, %c0_0, %c0_1] : memref<1x4x256xf32, #tpu.memory_space<vmem>>, vector<1x4x256xf32>
    %cst = arith.constant dense<0.000000e+00> : vector<1x4xf32>
    %1 = vector.multi_reduction <add>, %0, %cst [2] : vector<1x4x256xf32> to vector<1x4xf32>
    %2 = vector.shape_cast %1 : vector<1x4xf32> to vector<1x4x1xf32>
    %cst_2 = arith.constant dense<0.000000e+00> : vector<1x1xf32>
    %3 = vector.multi_reduction <add>, %2, %cst_2 [1] : vector<1x4x1xf32> to vector<1x1xf32>
    %4 = vector.shape_cast %3 : vector<1x1xf32> to vector<1x1x1xf32>
    %cst_3 = arith.constant 9.765625E-4 : f32
    %5 = vector.broadcast %cst_3 : f32 to vector<1x1x1xf32>
    %6 = arith.mulf %4, %5 : vector<1x1x1xf32>
    %c0_4 = arith.constant 0 : index
    %c0_5 = arith.constant 0 : index
    %c0_6 = arith.constant 0 : index
    %7 = vector.load %arg1[%c0_4, %c0_5, %c0_6] : memref<1x4x256xf32, #tpu.memory_space<vmem>>, vector<1x4x256xf32>
    %8 = vector.broadcast %6 : vector<1x1x1xf32> to vector<1x4x256xf32>
    %9 = arith.subf %7, %8 : vector<1x4x256xf32>
    %10 = arith.mulf %9, %9 : vector<1x4x256xf32>
    %cst_7 = arith.constant dense<0.000000e+00> : vector<1x4xf32>
    %11 = vector.multi_reduction <add>, %10, %cst_7 [2] : vector<1x4x256xf32> to vector<1x4xf32>
    %12 = vector.shape_cast %11 : vector<1x4xf32> to vector<1x4x1xf32>
    %cst_8 = arith.constant dense<0.000000e+00> : vector<1x1xf32>
    %13 = vector.multi_reduction <add>, %12, %cst_8 [1] : vector<1x4x1xf32> to vector<1x1xf32>
    %14 = vector.shape_cast %13 : vector<1x1xf32> to vector<1x1x1xf32>
    %cst_9 = arith.constant 9.765625E-4 : f32
    %15 = vector.broadcast %cst_9 : f32 to vector<1x1x1xf32>
    %16 = arith.mulf %14, %15 : vector<1x1x1xf32>
    %cst_10 = arith.constant 9.99999974E-6 : f32
    %17 = vector.broadcast %cst_10 : f32 to vector<1x1x1xf32>
    %18 = arith.addf %16, %17 : vector<1x1x1xf32>
    %19 = math.rsqrt %18 : vector<1x1x1xf32>
    %c0_11 = arith.constant 0 : index
    %c0_12 = arith.constant 0 : index
    %c0_13 = arith.constant 0 : index
    %20 = vector.load %arg5[%c0_11, %c0_12, %c0_13] : memref<1x1x1xf32, #tpu.memory_space<vmem>>, vector<1x1x1xf32>
    tpu.vector_store %arg5[%c0_11, %c0_12, %c0_13], %6 {strides = array<i32>} : memref<1x1x1xf32, #tpu.memory_space<vmem>>, vector<1x1x1xf32>,
    %cst_14 = arith.constant 9.99999974E-6 : f32
    %21 = vector.broadcast %cst_14 : f32 to vector<1x1x1xf32>
    %22 = arith.addf %16, %21 : vector<1x1x1xf32>
    %23 = math.sqrt %22 : vector<1x1x1xf32>
    %c0_15 = arith.constant 0 : index
    %c0_16 = arith.constant 0 : index
    %c0_17 = arith.constant 0 : index
    %24 = vector.load %arg6[%c0_15, %c0_16, %c0_17] : memref<1x1x1xf32, #tpu.memory_space<vmem>>, vector<1x1x1xf32>
    tpu.vector_store %arg6[%c0_15, %c0_16, %c0_17], %23 {strides = array<i32>} : memref<1x1x1xf32, #tpu.memory_space<vmem>>, vector<1x1x1xf32>,
    %c0_18 = arith.constant 0 : index
    %c0_19 = arith.constant 0 : index
    %c0_20 = arith.constant 0 : index
    %25 = vector.load %arg2[%c0_18, %c0_19, %c0_20] : memref<1x4x1xf32, #tpu.memory_space<vmem>>, vector<1x4x1xf32>
    %c0_21 = arith.constant 0 : index
    %c0_22 = arith.constant 0 : index
    %c0_23 = arith.constant 0 : index
    %26 = vector.load %arg3[%c0_21, %c0_22, %c0_23] : memref<1x4x1xf32, #tpu.memory_space<vmem>>, vector<1x4x1xf32>
    %27 = vector.broadcast %19 : vector<1x1x1xf32> to vector<1x4x1xf32>
    %28 = arith.mulf %27, %25 : vector<1x4x1xf32>
    %29 = vector.broadcast %6 : vector<1x1x1xf32> to vector<1x4x1xf32>
    %30 = arith.mulf %29, %28 : vector<1x4x1xf32>
    %31 = arith.subf %26, %30 : vector<1x4x1xf32>
    %c0_24 = arith.constant 0 : index
    %c0_25 = arith.constant 0 : index
    %c0_26 = arith.constant 0 : index
    %32 = vector.load %arg1[%c0_24, %c0_25, %c0_26] : memref<1x4x256xf32, #tpu.memory_space<vmem>>, vector<1x4x256xf32>
    %33 = vector.broadcast %28 : vector<1x4x1xf32> to vector<1x4x256xf32>
    %34 = arith.mulf %32, %33 : vector<1x4x256xf32>
    %35 = vector.broadcast %31 : vector<1x4x1xf32> to vector<1x4x256xf32>
    %36 = arith.addf %34, %35 : vector<1x4x256xf32>
    %c0_27 = arith.constant 0 : index
    %c0_28 = arith.constant 0 : index
    %c0_29 = arith.constant 0 : index
    %37 = vector.load %arg4[%c0_27, %c0_28, %c0_29] : memref<1x4x256xf32, #tpu.memory_space<vmem>>, vector<1x4x256xf32>
    tpu.vector_store %arg4[%c0_27, %c0_28, %c0_29], %36 {strides = array<i32>} : memref<1x4x256xf32, #tpu.memory_space<vmem>>, vector<1x4x256xf32>,
    return
  }
  func.func @transform_0(%arg0: i32) -> (i32, i32, i32) {
    %c0_i32 = arith.constant 0 : i32
    %c0_i32_0 = arith.constant 0 : i32
    %c0_i32_1 = arith.constant 0 : i32
    return %arg0, %c0_i32, %c0_i32_0 : i32, i32, i32
  }
  func.func @transform_1(%arg0: i32) -> (i32, i32, i32) {
    %c0_i32 = arith.constant 0 : i32
    %c0_i32_0 = arith.constant 0 : i32
    %c0_i32_1 = arith.constant 0 : i32
    %c0_i32_2 = arith.constant 0 : i32
    return %c0_i32, %c0_i32_0, %c0_i32_1 : i32, i32, i32
  }
  func.func @transform_2(%arg0: i32) -> (i32, i32, i32) {
    %c0_i32 = arith.constant 0 : i32
    %c0_i32_0 = arith.constant 0 : i32
    %c0_i32_1 = arith.constant 0 : i32
    %c0_i32_2 = arith.constant 0 : i32
    return %c0_i32, %c0_i32_0, %c0_i32_1 : i32, i32, i32
  }
  func.func @transform_3(%arg0: i32) -> (i32, i32, i32) {
    %c0_i32 = arith.constant 0 : i32
    %c0_i32_0 = arith.constant 0 : i32
    %c0_i32_1 = arith.constant 0 : i32
    return %arg0, %c0_i32, %c0_i32_0 : i32, i32, i32
  }
  func.func @transform_4(%arg0: i32) -> (i32, i32, i32) {
    %c0_i32 = arith.constant 0 : i32
    %c0_i32_0 = arith.constant 0 : i32
    %c0_i32_1 = arith.constant 0 : i32
    return %arg0, %c0_i32, %c0_i32_0 : i32, i32, i32
  }
  func.func @transform_5(%arg0: i32) -> (i32, i32, i32) {
    %c0_i32 = arith.constant 0 : i32
    %c0_i32_0 = arith.constant 0 : i32
    %c0_i32_1 = arith.constant 0 : i32
    return %arg0, %c0_i32, %c0_i32_0 : i32, i32, i32
  }
}

</mosaic_0001>

<llo_original>
// kernel: rln_forward.1
$region0: #{rln_forward.1}
  #allocation0 [shape = 'u32[]', space=smem, size = 0x4, offset = 0x4, fixed_abs, tag = 'smem constant byte address 0x4 - core index']
  #allocation1 [shape = 'u32[144,128]{1,0:T(1,128)}', space=vmem, size = 0x12000, scoped, tag = 'internal scratch']
  %s0 = inlined_call_operand.vmem [shape: f32[2,4,256], index: 0, kind: input, shape index: {}]
  %s1 = inlined_call_operand.vmem [shape: f32[1,4,1], index: 1, kind: input, shape index: {}]
  %s2 = inlined_call_operand.vmem [shape: f32[1,4,1], index: 2, kind: input, shape index: {}]
  %s3 = inlined_call_operand.vmem [shape: f32[2,4,256], index: 3, kind: output, shape index: {0}]
  %s4 = inlined_call_operand.vmem [shape: f32[2,1,1], index: 4, kind: output, shape index: {1}]
  %s5 = inlined_call_operand.vmem [shape: f32[2,1,1], index: 5, kind: output, shape index: {2}]
  %6 = xla_tuple %s3, %s4, %s5
  %s7 = sld [smem:[#allocation0]]
  $region61: #{rln_forward.1} parent=0
    _
  %s9 = ssub.s32 1, %s7
  %s10 = scalar_select 0, %s9, %s7
  loop: start=0, step=1, limit=4
  $region2: #{rln_forward.1} parent=0 // loop_pre_header
    _
  $region3: #{rln_forward.1} parent=0 // loop_header
    %s12 = sphi 0, %s16
    %p13 = scmp.ge.s32.totalorder %s12, 4
    %s22 = sphi 0, %s24
    %s25 = sphi 0, %s22
    %s26 = sphi 0, %s25
    %s42 = sphi 0, %s26
    %s46 = sphi 0, %s46
    %s48 = sphi 0, %s46
    %s49 = sphi 0, %s48
    %s63 = sphi 0, %s49
    %s67 = sphi 0, %s67
    %s69 = sphi 0, %s67
    %s70 = sphi 0, %s69
    %s84 = sphi 0, %s70
    %s90 = sphi 0, %s92
    %s93 = sphi 0, %s90
    %s94 = sphi 0, %s93
    %s110 = sphi 0, %s94
    %s116 = sphi 0, %s118
    %s119 = sphi 0, %s116
    %s120 = sphi 0, %s119
    %s136 = sphi 0, %s120
    %s142 = sphi 0, %s144
    %s145 = sphi 0, %s142
    %s146 = sphi 0, %s145
    %s162 = sphi 0, %s146
  $region4: #{rln_forward.1} parent=0 // loop_header_branch
    %15 = sbr.rel (%p13) target = $region8
  $region5: #{rln_forward.1} parent=0 // loop_body
    %s17 = ssub.s32 %s12, 1
    %s18 = ssub.s32 %s12, 2
    %s19 = sadd.s32 %s12, 1
    %s20 = ssub.s32 %s12, %s19
    %p21 = scmp.eq.s32.totalorder %s20, 0
    %s23 = sadd.s32 %s22, 1
    %s24 = scalar_select %p21, %s22, %s23
    %p27 = pneg %p21
    %p28 = scmp.eq.s32.totalorder %s12, 1
    %p29 = por %p27, %p28
    %p30 = scmp.ne.s32.totalorder %s22, %s25
    %p31 = scmp.eq.s32.totalorder %s12, 0
    %p32 = por %p30, %p31
    %p33 = scmp.ne.s32.totalorder %s22, %s25
    %p34 = scmp.eq.s32.totalorder %s17, 1
    %p35 = por %p33, %p34
    %p36 = scmp.ne.s32.totalorder %s25, %s26
    %p37 = scmp.eq.s32.totalorder %s17, 0
    %p38 = por %p36, %p37
    %p39 = scmp.ne.s32.totalorder %s25, %s26
    %p40 = scmp.eq.s32.totalorder %s18, 1
    %p41 = por %p39, %p40
    %p43 = scmp.ne.s32.totalorder %s26, %s42
    %p44 = scmp.eq.s32.totalorder %s18, 0
    %p45 = por %p43, %p44
    %s47 = sadd.s32 %s46, 1
    %p50 = scmp.eq.s32.totalorder %s12, 1
    %p51 = scmp.ne.s32.totalorder %s46, %s48
    %p52 = scmp.eq.s32.totalorder %s12, 0
    %p53 = por %p51, %p52
    %p54 = scmp.ne.s32.totalorder %s46, %s48
    %p55 = scmp.eq.s32.totalorder %s17, 1
    %p56 = por %p54, %p55
    %p57 = scmp.ne.s32.totalorder %s48, %s49
    %p58 = scmp.eq.s32.totalorder %s17, 0
    %p59 = por %p57, %p58
    %p60 = scmp.ne.s32.totalorder %s48, %s49
    %p61 = scmp.eq.s32.totalorder %s18, 1
    %p62 = por %p60, %p61
    %p64 = scmp.ne.s32.totalorder %s49, %s63
    %p65 = scmp.eq.s32.totalorder %s18, 0
    %p66 = por %p64, %p65
    %s68 = sadd.s32 %s67, 1
    %p71 = scmp.eq.s32.totalorder %s12, 1
    %p72 = scmp.ne.s32.totalorder %s67, %s69
    %p73 = scmp.eq.s32.totalorder %s12, 0
    %p74 = por %p72, %p73
    %p75 = scmp.ne.s32.totalorder %s67, %s69
    %p76 = scmp.eq.s32.totalorder %s17, 1
    %p77 = por %p75, %p76
    %p78 = scmp.ne.s32.totalorder %s69, %s70
    %p79 = scmp.eq.s32.totalorder %s17, 0
    %p80 = por %p78, %p79
    %p81 = scmp.ne.s32.totalorder %s69, %s70
    %p82 = scmp.eq.s32.totalorder %s18, 1
    %p83 = por %p81, %p82
    %p85 = scmp.ne.s32.totalorder %s70, %s84
    %p86 = scmp.eq.s32.totalorder %s18, 0
    %p87 = por %p85, %p86
    %s88 = ssub.s32 %s12, %s19
    %p89 = scmp.eq.s32.totalorder %s88, 0
    %s91 = sadd.s32 %s90, 1
    %s92 = scalar_select %p89, %s90, %s91
    %p95 = pneg %p89
    %p96 = scmp.eq.s32.totalorder %s12, 1
    %p97 = por %p95, %p96
    %p98 = scmp.ne.s32.totalorder %s90, %s93
    %p99 = scmp.eq.s32.totalorder %s12, 0
    %p100 = por %p98, %p99
    %p101 = scmp.ne.s32.totalorder %s90, %s93
    %p102 = scmp.eq.s32.totalorder %s17, 1
    %p103 = por %p101, %p102
    %p104 = scmp.ne.s32.totalorder %s93, %s94
    %p105 = scmp.eq.s32.totalorder %s17, 0
    %p106 = por %p104, %p105
    %p107 = scmp.ne.s32.totalorder %s93, %s94
    %p108 = scmp.eq.s32.totalorder %s18, 1
    %p109 = por %p107, %p108
    %p111 = scmp.ne.s32.totalorder %s94, %s110
    %p112 = scmp.eq.s32.totalorder %s18, 0
    %p113 = por %p111, %p112
    %s114 = ssub.s32 %s12, %s19
    %p115 = scmp.eq.s32.totalorder %s114, 0
    %s117 = sadd.s32 %s116, 1
    %s118 = scalar_select %p115, %s116, %s117
    %p121 = pneg %p115
    %p122 = scmp.eq.s32.totalorder %s12, 1
    %p123 = por %p121, %p122
    %p124 = scmp.ne.s32.totalorder %s116, %s119
    %p125 = scmp.eq.s32.totalorder %s12, 0
    %p126 = por %p124, %p125
    %p127 = scmp.ne.s32.totalorder %s116, %s119
    %p128 = scmp.eq.s32.totalorder %s17, 1
    %p129 = por %p127, %p128
    %p130 = scmp.ne.s32.totalorder %s119, %s120
    %p131 = scmp.eq.s32.totalorder %s17, 0
    %p132 = por %p130, %p131
    %p133 = scmp.ne.s32.totalorder %s119, %s120
    %p134 = scmp.eq.s32.totalorder %s18, 1
    %p135 = por %p133, %p134
    %p137 = scmp.ne.s32.totalorder %s120, %s136
    %p138 = scmp.eq.s32.totalorder %s18, 0
    %p139 = por %p137, %p138
    %s140 = ssub.s32 %s12, %s19
    %p141 = scmp.eq.s32.totalorder %s140, 0
    %s143 = sadd.s32 %s142, 1
    %s144 = scalar_select %p141, %s142, %s143
    %p147 = pneg %p141
    %p148 = scmp.eq.s32.totalorder %s12, 1
    %p149 = por %p147, %p148
    %p150 = scmp.ne.s32.totalorder %s142, %s145
    %p151 = scmp.eq.s32.totalorder %s12, 0
    %p152 = por %p150, %p151
    %p153 = scmp.ne.s32.totalorder %s142, %s145
    %p154 = scmp.eq.s32.totalorder %s17, 1
    %p155 = por %p153, %p154
    %p156 = scmp.ne.s32.totalorder %s145, %s146
    %p157 = scmp.eq.s32.totalorder %s17, 0
    %p158 = por %p156, %p157
    %p159 = scmp.ne.s32.totalorder %s145, %s146
    %p160 = scmp.eq.s32.totalorder %s18, 1
    %p161 = por %p159, %p160
    %p163 = scmp.ne.s32.totalorder %s146, %s162
    %p164 = scmp.eq.s32.totalorder %s18, 0
    %p165 = por %p163, %p164
    %p166 = scmp.le.s32.totalorder 1, %s12
    %p167 = scmp.lt.s32.totalorder %s12, 3
    %p168 = pnand %p166, %p167
    %p169 = pneg %p168
    // Predicated region
    $region9: #{rln_forward.1} parent=5 // pred_check
      _
    $region10: #{rln_forward.1} parent=5 // pred_check_branch
      %171 = sbr.rel (%p168) target = $region12
    $region11: #{rln_forward.1} parent=5 // pred_region
      %s172 = ssub.s32 %s12, 1
      // Predicated region
      $region13: #{rln_forward.1} parent=11 // pred_check
        %p173 = pneg %p59
      $region14: #{rln_forward.1} parent=11 // pred_check_branch
        %175 = sbr.rel (%p173) target = $region16
      $region15: #{rln_forward.1} parent=11 // pred_region
        _
      $region16: #{rln_forward.1} parent=11 // pred_fallthru
        _
      // Predicated region
      $region17: #{rln_forward.1} parent=11 // pred_check
        %p176 = pneg %p80
      $region18: #{rln_forward.1} parent=11 // pred_check_branch
        %178 = sbr.rel (%p176) target = $region20
      $region19: #{rln_forward.1} parent=11 // pred_region
        _
      $region20: #{rln_forward.1} parent=11 // pred_fallthru
        _
    $region12: #{rln_forward.1} parent=5 // pred_fallthru
      _
    %p179 = scmp.lt.s32.totalorder %s12, 2
    // Predicated region
    $region21: #{rln_forward.1} parent=5 // pred_check
      %p180 = pneg %p179
    $region22: #{rln_forward.1} parent=5 // pred_check_branch
      %182 = sbr.rel (%p180) target = $region24
    $region23: #{rln_forward.1} parent=5 // pred_region
      // Predicated region
      $region25: #{rln_forward.1} parent=23 // pred_check
        %p183 = pneg %p32
      $region26: #{rln_forward.1} parent=23 // pred_check_branch
        %185 = sbr.rel (%p183) target = $region28
      $region27: #{rln_forward.1} parent=23 // pred_region
        %p186 = scmp.lt.s32.totalorder %s12, 1
        %s187 = scalar_select %p186, %s12, 1
        %s188 = smul.addr %s187, 2
        %s189 = smul.addr %s188, 4
        %s190 = scalar_lea.vmem %s0, %s189
      $region28: #{rln_forward.1} parent=23 // pred_fallthru
        _
    $region24: #{rln_forward.1} parent=5 // pred_fallthru
      _
    %p191 = scmp.le.s32.totalorder 1, %s12
    %p192 = scmp.lt.s32.totalorder %s12, 3
    %p193 = pnand %p191, %p192
    %p194 = pneg %p193
    // Predicated region
    $region29: #{rln_forward.1} parent=5 // pred_check
      _
    $region30: #{rln_forward.1} parent=5 // pred_check_branch
      %196 = sbr.rel (%p193) target = $region32
    $region31: #{rln_forward.1} parent=5 // pred_region
      %s197 = ssub.s32 %s12, 1
      %p198 = scmp.lt.s32.totalorder %s17, 1
      %s199 = scalar_select %p198, %s17, 1
      %s200 = smul.addr %s199, 2
      %s201 = smul.addr %s200, 4
      %s202 = scalar_lea.vmem %s0, %s201
      %p203 = pneg %p38
      %p204 = pneg %p35
      %p205 = pneg %p59
      %p206 = pneg %p56
      %p207 = pneg %p80
      %p208 = pneg %p77
      %p209 = pneg %p106
      %p210 = pneg %p103
      %p211 = scmp.lt.s32.totalorder %s17, 1
      %s212 = scalar_select %p211, %s17, 1
      %s213 = smul.addr %s212, 2
      %s214 = smul.addr %s213, 4
      %s215 = scalar_lea.vmem %s3, %s214
      %p216 = pneg %p132
      %p217 = pneg %p129
      %p218 = scmp.lt.s32.totalorder %s17, 1
      %s219 = scalar_select %p218, %s17, 1
      %s220 = scalar_lea.vmem %s4, %s219
      %p221 = pneg %p158
      %p222 = pneg %p155
      %p223 = scmp.lt.s32.totalorder %s17, 1
      %s224 = scalar_select %p223, %s17, 1
      %s225 = scalar_lea.vmem %s5, %s224
      %p226 = scmp.lt.s32.totalorder %s17, 1
      %s227 = scalar_select %p226, %s17, 1
      %s228 = smul.addr %s227, 2
      %s229 = smul.addr %s228, 4
      %s230 = scalar_lea.vmem %s0, %s229
      %p231 = scmp.lt.s32.totalorder %s17, 1
      %s232 = scalar_select %p231, %s17, 1
      %s233 = smul.addr %s232, 2
      %s234 = smul.addr %s233, 4
      %s235 = scalar_lea.vmem %s3, %s234
      %p236 = scmp.lt.s32.totalorder %s17, 1
      %s237 = scalar_select %p236, %s17, 1
      %s238 = scalar_lea.vmem %s4, %s237
      %p239 = scmp.lt.s32.totalorder %s17, 1
      %s240 = scalar_select %p239, %s17, 1
      %s241 = scalar_lea.vmem %s5, %s240
      %v242 = vld [vmem:[%s230] sm:$0xff]
      %v244 = vcombine.high %v242, %v242
      %vm246 = vcmask 1043456
      %v247 = vsel %vm246, %v242, 0.0
      %v248 = vsel %vm246, %v244, 0.0
      %v249 = vadd.f32 %v247, %v248
      %250 = vadd.xlane.f32.xlu0 %v249
      %v251 = vpop.xlane.xlu0 %250
      %v252 = vsel %vm246, %v251, 0.0
      %v253 = vrot.slane %v252, 4
      %v254 = vadd.f32 %v252, %v253
      %v255 = vrot.slane %v254, 2
      %v256 = vadd.f32 %v254, %v255
      %v257 = vrot.slane %v256, 1
      %v258 = vadd.f32 %v256, %v257
      %v259 = vmul.f32 %v258, 0.0009765625
      %v260 = vsub.f32 %v242, %v259
      %v261 = vmul.f32 %v260, %v260
      %v263 = vcombine.high %v261, %v261
      %v265 = vsel %vm246, %v261, 0.0
      %v266 = vsel %vm246, %v263, 0.0
      %v267 = vadd.f32 %v265, %v266
      %268 = vadd.xlane.f32.xlu0 %v267
      %v269 = vpop.xlane.xlu0 %268
      %v270 = vsel %vm246, %v269, 0.0
      %v271 = vrot.slane %v270, 4
      %v272 = vadd.f32 %v270, %v271
      %v273 = vrot.slane %v272, 2
      %v274 = vadd.f32 %v272, %v273
      %v275 = vrot.slane %v274, 1
      %v276 = vadd.f32 %v274, %v275
      %v277 = vmul.f32 %v276, 0.0009765625
      %v278 = vadd.f32 %v277, 1e-05
      %v279 = vrsqrt.pop %v278
      %vm280 = vcmask 0
      %281 = vst.msk [vmem:[%s238] sm:$0x1] %vm280, %v259
      %v282 = vrsqrt.pop %v278
      %v283 = vmul.f32 %v278, %v282
      %vm284 = vcmp.eq.f32.partialorder %v278, inf
      %v285 = vsel %vm284, %v278, %v283
      %vm286 = vcmp.eq.f32.partialorder %v278, 0.0
      %v287 = vand.u32 %v278, 2147483648
      %v288 = vsel %vm286, %v287, %v285
      %289 = vst.msk [vmem:[%s241] sm:$0x1] %vm280, %v288
      %v290 = vld [vmem:[%s1] sm:$0xf]
      %v291 = vld [vmem:[%s2] sm:$0xf]
      %v292 = vmul.f32 %v279, %v290
      %v293 = vmul.f32 %v259, %v292
      %v294 = vsub.f32 %v291, %v293
      %v295 = vld [vmem:[%s230] sm:$0xff]
      %297 = vset.pattern.permute.xlu0 0
      %298 = vperm.xlu0 %297, %v292
      %v299 = vpop.permute.xlu0 %298
      %v301 = vunpack.c.l.s4 839922192
      %v302 = vunpack.c.0.s8 %v301
      %v303 = vlaneseq
      %v304 = vshrl.u32 %v303, 7
      %v305 = vsub.s32 %v302, %v304
      %v306 = vrot.slane %v299, %v305
      %v308 = vmul.f32 %v295, %v306
      %310 = vset.pattern.permute.xlu0 0
      %311 = vperm.xlu0 %310, %v294
      %v312 = vpop.permute.xlu0 %311
      %v314 = vunpack.c.l.s4 839922192
      %v315 = vunpack.c.0.s8 %v314
      %v316 = vlaneseq
      %v317 = vshrl.u32 %v316, 7
      %v318 = vsub.s32 %v315, %v317
      %v319 = vrot.slane %v312, %v318
      %v321 = vadd.f32 %v308, %v319
      %322 = vst [vmem:[%s235] sm:$0xff] %v321
      %p323 = scmp.lt.s32.totalorder %s17, 1
      %s324 = scalar_select %p323, %s17, 1
      %s325 = smul.addr %s324, 2
      %s326 = smul.addr %s325, 4
      %s327 = scalar_lea.vmem %s3, %s326
      %p328 = scmp.lt.s32.totalorder %s17, 1
      %s329 = scalar_select %p328, %s17, 1
      %s330 = scalar_lea.vmem %s4, %s329
      %p331 = scmp.lt.s32.totalorder %s17, 1
      %s332 = scalar_select %p331, %s17, 1
      %s333 = scalar_lea.vmem %s5, %s332
      // Predicated region
      $region33: #{rln_forward.1} parent=31 // pred_check
        %p334 = pneg %p103
      $region34: #{rln_forward.1} parent=31 // pred_check_branch
        %336 = sbr.rel (%p334) target = $region36
      $region35: #{rln_forward.1} parent=31 // pred_region
        _
      $region36: #{rln_forward.1} parent=31 // pred_fallthru
        _
      // Predicated region
      $region37: #{rln_forward.1} parent=31 // pred_check
        %p337 = pneg %p129
      $region38: #{rln_forward.1} parent=31 // pred_check_branch
        %339 = sbr.rel (%p337) target = $region40
      $region39: #{rln_forward.1} parent=31 // pred_region
        _
      $region40: #{rln_forward.1} parent=31 // pred_fallthru
        _
      // Predicated region
      $region41: #{rln_forward.1} parent=31 // pred_check
        %p340 = pneg %p155
      $region42: #{rln_forward.1} parent=31 // pred_check_branch
        %342 = sbr.rel (%p340) target = $region44
      $region43: #{rln_forward.1} parent=31 // pred_region
        _
      $region44: #{rln_forward.1} parent=31 // pred_fallthru
        _
    $region32: #{rln_forward.1} parent=5 // pred_fallthru
      _
    %p343 = scmp.le.s32.totalorder 2, %s12
    // Predicated region
    $region45: #{rln_forward.1} parent=5 // pred_check
      %p344 = pneg %p343
    $region46: #{rln_forward.1} parent=5 // pred_check_branch
      %346 = sbr.rel (%p344) target = $region48
    $region47: #{rln_forward.1} parent=5 // pred_region
      %s347 = ssub.s32 %s12, 2
      // Predicated region
      $region49: #{rln_forward.1} parent=47 // pred_check
        %p348 = pneg %p109
      $region50: #{rln_forward.1} parent=47 // pred_check_branch
        %350 = sbr.rel (%p348) target = $region52
      $region51: #{rln_forward.1} parent=47 // pred_region
        %p351 = scmp.lt.s32.totalorder %s18, 1
        %s352 = scalar_select %p351, %s18, 1
        %s353 = smul.addr %s352, 2
        %s354 = smul.addr %s353, 4
        %s355 = scalar_lea.vmem %s3, %s354
      $region52: #{rln_forward.1} parent=47 // pred_fallthru
        _
      // Predicated region
      $region53: #{rln_forward.1} parent=47 // pred_check
        %p356 = pneg %p135
      $region54: #{rln_forward.1} parent=47 // pred_check_branch
        %358 = sbr.rel (%p356) target = $region56
      $region55: #{rln_forward.1} parent=47 // pred_region
        %p359 = scmp.lt.s32.totalorder %s18, 1
        %s360 = scalar_select %p359, %s18, 1
        %s361 = scalar_lea.vmem %s4, %s360
      $region56: #{rln_forward.1} parent=47 // pred_fallthru
        _
      // Predicated region
      $region57: #{rln_forward.1} parent=47 // pred_check
        %p362 = pneg %p161
      $region58: #{rln_forward.1} parent=47 // pred_check_branch
        %364 = sbr.rel (%p362) target = $region60
      $region59: #{rln_forward.1} parent=47 // pred_region
        %p365 = scmp.lt.s32.totalorder %s18, 1
        %s366 = scalar_select %p365, %s18, 1
        %s367 = scalar_lea.vmem %s5, %s366
      $region60: #{rln_forward.1} parent=47 // pred_fallthru
        _
    $region48: #{rln_forward.1} parent=5 // pred_fallthru
      _
  $region6: #{rln_forward.1} parent=0 // loop_footer
    %s16 = sadd.s32 1, %s12
  $region7: #{rln_forward.1} parent=0 // loop_footer_branch
    %11 = sbr.rel target = $region3
  $region8: #{rln_forward.1} parent=0 // loop_exit
    _

</llo_original>
